<compile_context>
chip_gen: v7x
topology: tpu7x:2x2x1
jax: 0.10.0
libtpu: 0.0.40
codegen_flags: <defaults>
</compile_context>

<pallas_src>
import functools
import math

import jax
import jax.numpy as jnp
from jax.experimental import pallas as pl
from jax.experimental.pallas import tpu as pltpu


def _make_kernel(n_layers: int, b: int):
    """Fused forward kernel for a given n_layers and triplet size B."""

    def kernel(x_ref, w_ref, row_ref, out_ref):
        h = x_ref[...]  # (3B, D) f32, features zero-padded to width D

        # ---- MLP trunk: n_layers x (Linear -> BatchNorm1d(train) -> ReLU) ----
        for i in range(n_layers):
            w = w_ref[i]                                  # (D, D)
            bias = row_ref[pl.ds(3 * i + 0, 1), :]        # (1, D)
            gamma = row_ref[pl.ds(3 * i + 1, 1), :]       # (1, D)
            beta = row_ref[pl.ds(3 * i + 2, 1), :]        # (1, D)

            h = jnp.dot(h, w, preferred_element_type=jnp.float32) + bias
            # BatchNorm1d, training mode: batch mean, biased variance.
            mean = jnp.mean(h, axis=0, keepdims=True)
            var = jnp.mean((h - mean) ** 2, axis=0, keepdims=True)
            scale = gamma * jax.lax.rsqrt(var + 1e-5)     # (1, D), rsqrt -> EUP
            h = h * scale + (beta - mean * scale)         # folded affine
            h = jnp.maximum(h, 0.0)                       # ReLU

        # ---- embedding Linear ----
        w_emb = w_ref[n_layers]                           # (D, D)
        b_emb = row_ref[pl.ds(3 * n_layers, 1), :]        # (1, D)
        z = jnp.dot(h, w_emb, preferred_element_type=jnp.float32) + b_emb  # (3B, D)

        # ---- triplet distances + discriminator (VPU mul + lane reduce) ----
        anchor = z[0:b]
        positive = z[b:2 * b]
        negative = z[2 * b:3 * b]
        w_disc = row_ref[pl.ds(3 * n_layers + 1, 1), :]   # (1, D), zero past E
        b_disc = row_ref[pl.ds(3 * n_layers + 2, 1), :][:, 0:1]  # (1, 1)

        out_ref[0:b, :] = (
            jnp.sum(jnp.abs(anchor - positive) * w_disc, axis=-1, keepdims=True)
            + b_disc
        )
        out_ref[b:2 * b, :] = (
            jnp.sum(jnp.abs(anchor - negative) * w_disc, axis=-1, keepdims=True)
            + b_disc
        )

    return kernel


def contrastive_net_forward_batched(x, w_slab, row_slab, *, n_layers: int):
    """NB independent ContrastiveNet forwards in one Pallas launch.

    x: (NB, 3B, in_features) f32.  Returns (NB, 2B, 1) f32.
    """
    nb, n_total, in_feat = x.shape
    assert n_total % 3 == 0, "rows must be divisible by 3 (anchor/pos/neg)"
    b = n_total // 3
    d = w_slab.shape[-1]

    # Zero-pad input features to the packed width D (tiny XLA op, outside kernel).
    x_p = jnp.zeros((nb, n_total, d), jnp.float32).at[:, :, :in_feat].set(x)

    kernel = _make_kernel(n_layers, b)
    out = pl.pallas_call(
        kernel,
        out_shape=jax.ShapeDtypeStruct((nb, 2 * b, 1), jnp.float32),
        grid=(nb,),
        in_specs=[
            pl.BlockSpec((None, n_total, d), lambda n: (n, 0, 0)),   # per-batch x
            pl.BlockSpec(w_slab.shape, lambda n: (0, 0, 0)),         # resident weights
            pl.BlockSpec(row_slab.shape, lambda n: (0, 0)),          # resident rows
        ],
        out_specs=pl.BlockSpec((None, 2 * b, 1), lambda n: (n, 0, 0)),
        compiler_params=pltpu.CompilerParams(
            dimension_semantics=("parallel",)),   # 2x on v7x, no-op on v5e/v6e
    )(x_p, w_slab, row_slab)
    return out


def contrastive_net_forward(x, w_slab, row_slab, *, n_layers: int):
    """Single forward matching ContrastiveNet.forward: x (3B, 2) -> (2B, 1)."""
    return contrastive_net_forward_batched(
        x[None], w_slab, row_slab, n_layers=n_layers)[0]


def init_and_pack_params(key, n_layers, n_units, embedding_size, in_features=2):
    """PyTorch-Linear-like init, packed into (w_slab, row_slab) with zero padding."""
    d = max(in_features, n_units, embedding_size)
    w_slab = jnp.zeros((n_layers + 1, d, d), jnp.float32)
    row_slab = jnp.zeros((3 * n_layers + 3, d), jnp.float32)

    in_dim = in_features
    for i in range(n_layers):
        key, kw, kb = jax.random.split(key, 3)
        bound = 1.0 / math.sqrt(in_dim)
        w = jax.random.uniform(kw, (in_dim, n_units), jnp.float32, -bound, bound)
        bias = jax.random.uniform(kb, (n_units,), jnp.float32, -bound, bound)
        w_slab = w_slab.at[i, :in_dim, :n_units].set(w)
        row_slab = row_slab.at[3 * i + 0, :n_units].set(bias)
        row_slab = row_slab.at[3 * i + 1, :n_units].set(1.0)   # BN gamma = 1
        # BN beta row (3*i+2) stays 0.
        in_dim = n_units

    # embedding Linear(n_units, embedding_size)
    key, kw, kb = jax.random.split(key, 3)
    bound = 1.0 / math.sqrt(in_dim)
    w_emb = jax.random.uniform(kw, (in_dim, embedding_size), jnp.float32, -bound, bound)
    b_emb = jax.random.uniform(kb, (embedding_size,), jnp.float32, -bound, bound)
    w_slab = w_slab.at[n_layers, :in_dim, :embedding_size].set(w_emb)
    row_slab = row_slab.at[3 * n_layers, :embedding_size].set(b_emb)

    # discriminator Linear(embedding_size, 1) -> stored as a row + scalar row
    key, kw, kb = jax.random.split(key, 3)
    bound = 1.0 / math.sqrt(embedding_size)
    w_disc = jax.random.uniform(kw, (embedding_size,), jnp.float32, -bound, bound)
    b_disc = jax.random.uniform(kb, (), jnp.float32, -bound, bound)
    row_slab = row_slab.at[3 * n_layers + 1, :embedding_size].set(w_disc)
    row_slab = row_slab.at[3 * n_layers + 2, :].set(b_disc)  # broadcast-filled
    return w_slab, row_slab


def reference_forward(x, w_slab, row_slab, n_layers):
    """Pure-JAX reference mirroring ContrastiveNet.forward (training-mode BN)."""
    nb, n_total, in_feat = x.shape
    d = w_slab.shape[-1]
    b = n_total // 3
    h = jnp.zeros((nb, n_total, d), jnp.float32).at[:, :, :in_feat].set(x)
    for i in range(n_layers):
        h = jnp.einsum("bnd,de->bne", h, w_slab[i]) + row_slab[3 * i]
        mean = jnp.mean(h, axis=1, keepdims=True)
        var = jnp.mean((h - mean) ** 2, axis=1, keepdims=True)
        h = (h - mean) * jax.lax.rsqrt(var + 1e-5) * row_slab[3 * i + 1] \
            + row_slab[3 * i + 2]
        h = jnp.maximum(h, 0.0)
    z = jnp.einsum("bnd,de->bne", h, w_slab[n_layers]) + row_slab[3 * n_layers]
    anchor, positive, negative = z[:, 0:b], z[:, b:2 * b], z[:, 2 * b:3 * b]
    w_disc = row_slab[3 * n_layers + 1]
    b_disc = row_slab[3 * n_layers + 2, 0]
    da = jnp.sum(jnp.abs(anchor - positive) * w_disc, axis=-1, keepdims=True) + b_disc
    dn = jnp.sum(jnp.abs(anchor - negative) * w_disc, axis=-1, keepdims=True) + b_disc
    return jnp.concatenate([da, dn], axis=1)


if __name__ == "__main__":
    # Small shapes consistent with the module:
    #   n_layers=2, n_units=32, embedding_size=16, triplet size B=8 (x: 3*B x 2)
    #   NB=4 independent forward passes fused into one launch via the grid.
    n_layers = 2
    n_units = 32
    embedding_size = 16
    B = 8
    NB = 4

    key = jax.random.PRNGKey(0)
    key, kx = jax.random.split(key)
    x = jax.random.normal(kx, (NB, 3 * B, 2), dtype=jnp.float32)

    w_slab, row_slab = init_and_pack_params(key, n_layers, n_units, embedding_size)

    fwd = jax.jit(functools.partial(contrastive_net_forward_batched,
                                    n_layers=n_layers))
    out = fwd(x, w_slab, row_slab)
    jax.block_until_ready(out)

    assert out.shape == (NB, 2 * B, 1)
    assert out.dtype == jnp.float32

    ref = reference_forward(x, w_slab, row_slab, n_layers)
    err = float(jnp.max(jnp.abs(out - ref)))
    assert err < 5e-3, f"kernel/reference mismatch: max abs err {err}"

    # Single-forward path matching the nn.Module signature: (3B, 2) -> (2B, 1).
    single = contrastive_net_forward(x[0], w_slab, row_slab, n_layers=n_layers)
    jax.block_until_ready(single)
    assert single.shape == (2 * B, 1)

    print("KERNEL_OK")
</pallas_src>

<mosaic_0001>
module attributes {stable_mosaic.version = 11 : i64} {
  func.func @kernel(%arg0: i32, %arg1: memref<1x24x32xf32, #tpu.memory_space<vmem>>, %arg2: memref<3x32x32xf32, #tpu.memory_space<vmem>>, %arg3: memref<9x32xf32, #tpu.memory_space<vmem>>, %arg4: memref<1x16x1xf32, #tpu.memory_space<vmem>>) attributes {dimension_semantics = [#tpu.dimension_semantics<parallel>], iteration_bounds = array<i64: 4>, scalar_prefetch = 0 : i64, scratch_operands = 0 : i64, tpu.core_type = #tpu.core_type<tc>, window_params = [{transform_indices = @transform_0, window_bounds = array<i64: 1, 24, 32>}, {pipeline_mode = #tpu.pipeline_mode<synchronous>, transform_indices = @transform_1, window_bounds = array<i64: 3, 32, 32>}, {pipeline_mode = #tpu.pipeline_mode<synchronous>, transform_indices = @transform_2, window_bounds = array<i64: 9, 32>}, {transform_indices = @transform_3, window_bounds = array<i64: 1, 16, 1>}]} {
    %c0 = arith.constant 0 : index
    %c0_0 = arith.constant 0 : index
    %c0_1 = arith.constant 0 : index
    %0 = vector.load %arg1[%c0, %c0_0, %c0_1] : memref<1x24x32xf32, #tpu.memory_space<vmem>>, vector<1x24x32xf32>
    %1 = vector.shape_cast %0 : vector<1x24x32xf32> to vector<24x32xf32>
    %c0_2 = arith.constant 0 : index
    %c0_3 = arith.constant 0 : index
    %c0_4 = arith.constant 0 : index
    %2 = vector.load %arg2[%c0_2, %c0_3, %c0_4] : memref<3x32x32xf32, #tpu.memory_space<vmem>>, vector<1x32x32xf32>
    %3 = vector.shape_cast %2 : vector<1x32x32xf32> to vector<32x32xf32>
    %c0_5 = arith.constant 0 : index
    %c0_6 = arith.constant 0 : index
    %4 = vector.load %arg3[%c0_5, %c0_6] : memref<9x32xf32, #tpu.memory_space<vmem>>, vector<1x32xf32>
    %c1 = arith.constant 1 : index
    %c0_7 = arith.constant 0 : index
    %5 = vector.load %arg3[%c1, %c0_7] : memref<9x32xf32, #tpu.memory_space<vmem>>, vector<1x32xf32>
    %c2 = arith.constant 2 : index
    %c0_8 = arith.constant 0 : index
    %6 = vector.load %arg3[%c2, %c0_8] : memref<9x32xf32, #tpu.memory_space<vmem>>, vector<1x32xf32>
    %cst = arith.constant dense<0.000000e+00> : vector<24x32xf32>
    %7 = tpu.matmul %1, %3, %cst {dimension_numbers = #tpu.dot_dimension_numbers<[1], [0], [0], [1], [0, 0, 1, 1], [], []>} : vector<24x32xf32>, vector<32x32xf32>, vector<24x32xf32> -> vector<24x32xf32>
    %8 = vector.broadcast %4 : vector<1x32xf32> to vector<24x32xf32>
    %9 = arith.addf %7, %8 : vector<24x32xf32>
    %cst_9 = arith.constant dense<0.000000e+00> : vector<32xf32>
    %10 = vector.multi_reduction <add>, %9, %cst_9 [0] : vector<24x32xf32> to vector<32xf32>
    %11 = vector.shape_cast %10 : vector<32xf32> to vector<1x32xf32>
    %cst_10 = arith.constant 2.400000e+01 : f32
    %12 = vector.broadcast %cst_10 : f32 to vector<1x32xf32>
    %13 = arith.divf %11, %12 : vector<1x32xf32>
    %14 = vector.broadcast %13 : vector<1x32xf32> to vector<24x32xf32>
    %15 = arith.subf %9, %14 : vector<24x32xf32>
    %16 = arith.mulf %15, %15 : vector<24x32xf32>
    %cst_11 = arith.constant dense<0.000000e+00> : vector<32xf32>
    %17 = vector.multi_reduction <add>, %16, %cst_11 [0] : vector<24x32xf32> to vector<32xf32>
    %18 = vector.shape_cast %17 : vector<32xf32> to vector<1x32xf32>
    %cst_12 = arith.constant 2.400000e+01 : f32
    %19 = vector.broadcast %cst_12 : f32 to vector<1x32xf32>
    %20 = arith.divf %18, %19 : vector<1x32xf32>
    %cst_13 = arith.constant 9.99999974E-6 : f32
    %21 = vector.broadcast %cst_13 : f32 to vector<1x32xf32>
    %22 = arith.addf %20, %21 : vector<1x32xf32>
    %23 = math.rsqrt %22 : vector<1x32xf32>
    %24 = arith.mulf %5, %23 : vector<1x32xf32>
    %25 = vector.broadcast %24 : vector<1x32xf32> to vector<24x32xf32>
    %26 = arith.mulf %9, %25 : vector<24x32xf32>
    %27 = arith.mulf %13, %24 : vector<1x32xf32>
    %28 = arith.subf %6, %27 : vector<1x32xf32>
    %29 = vector.broadcast %28 : vector<1x32xf32> to vector<24x32xf32>
    %30 = arith.addf %26, %29 : vector<24x32xf32>
    %cst_14 = arith.constant 0.000000e+00 : f32
    %31 = vector.broadcast %cst_14 : f32 to vector<24x32xf32>
    %32 = arith.maximumf %30, %31 : vector<24x32xf32>
    %c1_15 = arith.constant 1 : index
    %c0_16 = arith.constant 0 : index
    %c0_17 = arith.constant 0 : index
    %33 = vector.load %arg2[%c1_15, %c0_16, %c0_17] : memref<3x32x32xf32, #tpu.memory_space<vmem>>, vector<1x32x32xf32>
    %34 = vector.shape_cast %33 : vector<1x32x32xf32> to vector<32x32xf32>
    %c3 = arith.constant 3 : index
    %c0_18 = arith.constant 0 : index
    %35 = vector.load %arg3[%c3, %c0_18] : memref<9x32xf32, #tpu.memory_space<vmem>>, vector<1x32xf32>
    %c4 = arith.constant 4 : index
    %c0_19 = arith.constant 0 : index
    %36 = vector.load %arg3[%c4, %c0_19] : memref<9x32xf32, #tpu.memory_space<vmem>>, vector<1x32xf32>
    %c5 = arith.constant 5 : index
    %c0_20 = arith.constant 0 : index
    %37 = vector.load %arg3[%c5, %c0_20] : memref<9x32xf32, #tpu.memory_space<vmem>>, vector<1x32xf32>
    %cst_21 = arith.constant dense<0.000000e+00> : vector<24x32xf32>
    %38 = tpu.matmul %32, %34, %cst_21 {dimension_numbers = #tpu.dot_dimension_numbers<[1], [0], [0], [1], [0, 0, 1, 1], [], []>} : vector<24x32xf32>, vector<32x32xf32>, vector<24x32xf32> -> vector<24x32xf32>
    %39 = vector.broadcast %35 : vector<1x32xf32> to vector<24x32xf32>
    %40 = arith.addf %38, %39 : vector<24x32xf32>
    %cst_22 = arith.constant dense<0.000000e+00> : vector<32xf32>
    %41 = vector.multi_reduction <add>, %40, %cst_22 [0] : vector<24x32xf32> to vector<32xf32>
    %42 = vector.shape_cast %41 : vector<32xf32> to vector<1x32xf32>
    %cst_23 = arith.constant 2.400000e+01 : f32
    %43 = vector.broadcast %cst_23 : f32 to vector<1x32xf32>
    %44 = arith.divf %42, %43 : vector<1x32xf32>
    %45 = vector.broadcast %44 : vector<1x32xf32> to vector<24x32xf32>
    %46 = arith.subf %40, %45 : vector<24x32xf32>
    %47 = arith.mulf %46, %46 : vector<24x32xf32>
    %cst_24 = arith.constant dense<0.000000e+00> : vector<32xf32>
    %48 = vector.multi_reduction <add>, %47, %cst_24 [0] : vector<24x32xf32> to vector<32xf32>
    %49 = vector.shape_cast %48 : vector<32xf32> to vector<1x32xf32>
    %cst_25 = arith.constant 2.400000e+01 : f32
    %50 = vector.broadcast %cst_25 : f32 to vector<1x32xf32>
    %51 = arith.divf %49, %50 : vector<1x32xf32>
    %cst_26 = arith.constant 9.99999974E-6 : f32
    %52 = vector.broadcast %cst_26 : f32 to vector<1x32xf32>
    %53 = arith.addf %51, %52 : vector<1x32xf32>
    %54 = math.rsqrt %53 : vector<1x32xf32>
    %55 = arith.mulf %36, %54 : vector<1x32xf32>
    %56 = vector.broadcast %55 : vector<1x32xf32> to vector<24x32xf32>
    %57 = arith.mulf %40, %56 : vector<24x32xf32>
    %58 = arith.mulf %44, %55 : vector<1x32xf32>
    %59 = arith.subf %37, %58 : vector<1x32xf32>
    %60 = vector.broadcast %59 : vector<1x32xf32> to vector<24x32xf32>
    %61 = arith.addf %57, %60 : vector<24x32xf32>
    %cst_27 = arith.constant 0.000000e+00 : f32
    %62 = vector.broadcast %cst_27 : f32 to vector<24x32xf32>
    %63 = arith.maximumf %61, %62 : vector<24x32xf32>
    %c2_28 = arith.constant 2 : index
    %c0_29 = arith.constant 0 : index
    %c0_30 = arith.constant 0 : index
    %64 = vector.load %arg2[%c2_28, %c0_29, %c0_30] : memref<3x32x32xf32, #tpu.memory_space<vmem>>, vector<1x32x32xf32>
    %65 = vector.shape_cast %64 : vector<1x32x32xf32> to vector<32x32xf32>
    %c6 = arith.constant 6 : index
    %c0_31 = arith.constant 0 : index
    %66 = vector.load %arg3[%c6, %c0_31] : memref<9x32xf32, #tpu.memory_space<vmem>>, vector<1x32xf32>
    %cst_32 = arith.constant dense<0.000000e+00> : vector<24x32xf32>
    %67 = tpu.matmul %63, %65, %cst_32 {dimension_numbers = #tpu.dot_dimension_numbers<[1], [0], [0], [1], [0, 0, 1, 1], [], []>} : vector<24x32xf32>, vector<32x32xf32>, vector<24x32xf32> -> vector<24x32xf32>
    %68 = vector.broadcast %66 : vector<1x32xf32> to vector<24x32xf32>
    %69 = arith.addf %67, %68 : vector<24x32xf32>
    %70 = vector.extract_strided_slice %69 {offsets = [0, 0], sizes = [8, 32], strides = [1, 1]} : vector<24x32xf32> to vector<8x32xf32>
    %71 = vector.extract_strided_slice %69 {offsets = [8, 0], sizes = [8, 32], strides = [1, 1]} : vector<24x32xf32> to vector<8x32xf32>
    %72 = vector.extract_strided_slice %69 {offsets = [16, 0], sizes = [8, 32], strides = [1, 1]} : vector<24x32xf32> to vector<8x32xf32>
    %c7 = arith.constant 7 : index
    %c0_33 = arith.constant 0 : index
    %73 = vector.load %arg3[%c7, %c0_33] : memref<9x32xf32, #tpu.memory_space<vmem>>, vector<1x32xf32>
    %c8 = arith.constant 8 : index
    %c0_34 = arith.constant 0 : index
    %74 = vector.load %arg3[%c8, %c0_34] : memref<9x32xf32, #tpu.memory_space<vmem>>, vector<1x32xf32>
    %75 = vector.extract_strided_slice %74 {offsets = [0, 0], sizes = [1, 1], strides = [1, 1]} : vector<1x32xf32> to vector<1x1xf32>
    %76 = arith.subf %70, %71 : vector<8x32xf32>
    %77 = math.absf %76 : vector<8x32xf32>
    %78 = vector.broadcast %73 : vector<1x32xf32> to vector<8x32xf32>
    %79 = arith.mulf %77, %78 : vector<8x32xf32>
    %cst_35 = arith.constant dense<0.000000e+00> : vector<8xf32>
    %80 = vector.multi_reduction <add>, %79, %cst_35 [1] : vector<8x32xf32> to vector<8xf32>
    %81 = vector.shape_cast %80 : vector<8xf32> to vector<8x1xf32>
    %82 = vector.broadcast %75 : vector<1x1xf32> to vector<8x1xf32>
    %83 = arith.addf %81, %82 : vector<8x1xf32>
    %c0_36 = arith.constant 0 : index
    %c0_37 = arith.constant 0 : index
    %c0_38 = arith.constant 0 : index
    %84 = vector.load %arg4[%c0_36, %c0_37, %c0_38] : memref<1x16x1xf32, #tpu.memory_space<vmem>>, vector<1x8x1xf32>
    %85 = vector.shape_cast %84 : vector<1x8x1xf32> to vector<8x1xf32>
    %86 = vector.shape_cast %83 : vector<8x1xf32> to vector<1x8x1xf32>
    tpu.vector_store %arg4[%c0_36, %c0_37, %c0_38], %86 {strides = array<i32>} : memref<1x16x1xf32, #tpu.memory_space<vmem>>, vector<1x8x1xf32>,
    %87 = arith.subf %70, %72 : vector<8x32xf32>
    %88 = math.absf %87 : vector<8x32xf32>
    %89 = vector.broadcast %73 : vector<1x32xf32> to vector<8x32xf32>
    %90 = arith.mulf %88, %89 : vector<8x32xf32>
    %cst_39 = arith.constant dense<0.000000e+00> : vector<8xf32>
    %91 = vector.multi_reduction <add>, %90, %cst_39 [1] : vector<8x32xf32> to vector<8xf32>
    %92 = vector.shape_cast %91 : vector<8xf32> to vector<8x1xf32>
    %93 = vector.broadcast %75 : vector<1x1xf32> to vector<8x1xf32>
    %94 = arith.addf %92, %93 : vector<8x1xf32>
    %c0_40 = arith.constant 0 : index
    %c8_41 = arith.constant 8 : index
    %c0_42 = arith.constant 0 : index
    %95 = vector.load %arg4[%c0_40, %c8_41, %c0_42] : memref<1x16x1xf32, #tpu.memory_space<vmem>>, vector<1x8x1xf32>
    %96 = vector.shape_cast %95 : vector<1x8x1xf32> to vector<8x1xf32>
    %97 = vector.shape_cast %94 : vector<8x1xf32> to vector<1x8x1xf32>
    tpu.vector_store %arg4[%c0_40, %c8_41, %c0_42], %97 {strides = array<i32>} : memref<1x16x1xf32, #tpu.memory_space<vmem>>, vector<1x8x1xf32>,
    return
  }
  func.func @transform_0(%arg0: i32) -> (i32, i32, i32) {
    %c0_i32 = arith.constant 0 : i32
    %c0_i32_0 = arith.constant 0 : i32
    %c0_i32_1 = arith.constant 0 : i32
    return %arg0, %c0_i32, %c0_i32_0 : i32, i32, i32
  }
  func.func @transform_1(%arg0: i32) -> (i32, i32, i32) {
    %c0_i32 = arith.constant 0 : i32
    %c0_i32_0 = arith.constant 0 : i32
    %c0_i32_1 = arith.constant 0 : i32
    %c0_i32_2 = arith.constant 0 : i32
    return %c0_i32, %c0_i32_0, %c0_i32_1 : i32, i32, i32
  }
  func.func @transform_2(%arg0: i32) -> (i32, i32) {
    %c0_i32 = arith.constant 0 : i32
    %c0_i32_0 = arith.constant 0 : i32
    %c0_i32_1 = arith.constant 0 : i32
    return %c0_i32, %c0_i32_0 : i32, i32
  }
  func.func @transform_3(%arg0: i32) -> (i32, i32, i32) {
    %c0_i32 = arith.constant 0 : i32
    %c0_i32_0 = arith.constant 0 : i32
    %c0_i32_1 = arith.constant 0 : i32
    return %arg0, %c0_i32, %c0_i32_0 : i32, i32, i32
  }
}

</mosaic_0001>

<llo_original>
// kernel: contrastive_net_forward_batched.1
$region0: #{contrastive_net_forward_batched.1}
  #allocation0 [shape = 'u32[]', space=smem, size = 0x4, offset = 0x4, fixed_abs, tag = 'smem constant byte address 0x4 - core index']
  #allocation1 [shape = 'u32[144,128]{1,0:T(1,128)}', space=vmem, size = 0x12000, scoped, tag = 'internal scratch']
  %s0 = inlined_call_operand.vmem [shape: f32[4,24,32], index: 0, kind: input, shape index: {}]
  %s1 = inlined_call_operand.vmem [shape: f32[3,32,32], index: 1, kind: input, shape index: {}]
  %s2 = inlined_call_operand.vmem [shape: f32[9,32], index: 2, kind: input, shape index: {}]
  %s3 = inlined_call_operand.vmem [shape: f32[4,16,1], index: 3, kind: output, shape index: {}]
  %s4 = sld [smem:[#allocation0]]
  $region45: #{contrastive_net_forward_batched.1} parent=0
    _
  %s6 = ssub.s32 1, %s4
  %s7 = scalar_select 0, %s6, %s4
  loop: start=0, step=1, limit=6
  $region2: #{contrastive_net_forward_batched.1} parent=0 // loop_pre_header
    _
  $region3: #{contrastive_net_forward_batched.1} parent=0 // loop_header
    %s9 = sphi 0, %s13
    %p10 = scmp.ge.s32.totalorder %s9, 6
    %s19 = sphi 0, %s21
    %s22 = sphi 0, %s19
    %s23 = sphi 0, %s22
    %s39 = sphi 0, %s23
    %s43 = sphi 0, %s43
    %s45 = sphi 0, %s43
    %s46 = sphi 0, %s45
    %s60 = sphi 0, %s46
    %s64 = sphi 0, %s64
    %s66 = sphi 0, %s64
    %s67 = sphi 0, %s66
    %s81 = sphi 0, %s67
    %s87 = sphi 0, %s89
    %s90 = sphi 0, %s87
    %s91 = sphi 0, %s90
    %s107 = sphi 0, %s91
  $region4: #{contrastive_net_forward_batched.1} parent=0 // loop_header_branch
    %12 = sbr.rel (%p10) target = $region8
  $region5: #{contrastive_net_forward_batched.1} parent=0 // loop_body
    %s14 = ssub.s32 %s9, 1
    %s15 = ssub.s32 %s9, 2
    %s16 = sadd.s32 %s9, 1
    %s17 = ssub.s32 %s9, %s16
    %p18 = scmp.eq.s32.totalorder %s17, 0
    %s20 = sadd.s32 %s19, 1
    %s21 = scalar_select %p18, %s19, %s20
    %p24 = pneg %p18
    %p25 = scmp.eq.s32.totalorder %s9, 3
    %p26 = por %p24, %p25
    %p27 = scmp.ne.s32.totalorder %s19, %s22
    %p28 = scmp.eq.s32.totalorder %s9, 0
    %p29 = por %p27, %p28
    %p30 = scmp.ne.s32.totalorder %s19, %s22
    %p31 = scmp.eq.s32.totalorder %s14, 3
    %p32 = por %p30, %p31
    %p33 = scmp.ne.s32.totalorder %s22, %s23
    %p34 = scmp.eq.s32.totalorder %s14, 0
    %p35 = por %p33, %p34
    %p36 = scmp.ne.s32.totalorder %s22, %s23
    %p37 = scmp.eq.s32.totalorder %s15, 3
    %p38 = por %p36, %p37
    %p40 = scmp.ne.s32.totalorder %s23, %s39
    %p41 = scmp.eq.s32.totalorder %s15, 0
    %p42 = por %p40, %p41
    %s44 = sadd.s32 %s43, 1
    %p47 = scmp.eq.s32.totalorder %s9, 3
    %p48 = scmp.ne.s32.totalorder %s43, %s45
    %p49 = scmp.eq.s32.totalorder %s9, 0
    %p50 = por %p48, %p49
    %p51 = scmp.ne.s32.totalorder %s43, %s45
    %p52 = scmp.eq.s32.totalorder %s14, 3
    %p53 = por %p51, %p52
    %p54 = scmp.ne.s32.totalorder %s45, %s46
    %p55 = scmp.eq.s32.totalorder %s14, 0
    %p56 = por %p54, %p55
    %p57 = scmp.ne.s32.totalorder %s45, %s46
    %p58 = scmp.eq.s32.totalorder %s15, 3
    %p59 = por %p57, %p58
    %p61 = scmp.ne.s32.totalorder %s46, %s60
    %p62 = scmp.eq.s32.totalorder %s15, 0
    %p63 = por %p61, %p62
    %s65 = sadd.s32 %s64, 1
    %p68 = scmp.eq.s32.totalorder %s9, 3
    %p69 = scmp.ne.s32.totalorder %s64, %s66
    %p70 = scmp.eq.s32.totalorder %s9, 0
    %p71 = por %p69, %p70
    %p72 = scmp.ne.s32.totalorder %s64, %s66
    %p73 = scmp.eq.s32.totalorder %s14, 3
    %p74 = por %p72, %p73
    %p75 = scmp.ne.s32.totalorder %s66, %s67
    %p76 = scmp.eq.s32.totalorder %s14, 0
    %p77 = por %p75, %p76
    %p78 = scmp.ne.s32.totalorder %s66, %s67
    %p79 = scmp.eq.s32.totalorder %s15, 3
    %p80 = por %p78, %p79
    %p82 = scmp.ne.s32.totalorder %s67, %s81
    %p83 = scmp.eq.s32.totalorder %s15, 0
    %p84 = por %p82, %p83
    %s85 = ssub.s32 %s9, %s16
    %p86 = scmp.eq.s32.totalorder %s85, 0
    %s88 = sadd.s32 %s87, 1
    %s89 = scalar_select %p86, %s87, %s88
    %p92 = pneg %p86
    %p93 = scmp.eq.s32.totalorder %s9, 3
    %p94 = por %p92, %p93
    %p95 = scmp.ne.s32.totalorder %s87, %s90
    %p96 = scmp.eq.s32.totalorder %s9, 0
    %p97 = por %p95, %p96
    %p98 = scmp.ne.s32.totalorder %s87, %s90
    %p99 = scmp.eq.s32.totalorder %s14, 3
    %p100 = por %p98, %p99
    %p101 = scmp.ne.s32.totalorder %s90, %s91
    %p102 = scmp.eq.s32.totalorder %s14, 0
    %p103 = por %p101, %p102
    %p104 = scmp.ne.s32.totalorder %s90, %s91
    %p105 = scmp.eq.s32.totalorder %s15, 3
    %p106 = por %p104, %p105
    %p108 = scmp.ne.s32.totalorder %s91, %s107
    %p109 = scmp.eq.s32.totalorder %s15, 0
    %p110 = por %p108, %p109
    %p111 = scmp.le.s32.totalorder 1, %s9
    %p112 = scmp.lt.s32.totalorder %s9, 5
    %p113 = pnand %p111, %p112
    %p114 = pneg %p113
    // Predicated region
    $region9: #{contrastive_net_forward_batched.1} parent=5 // pred_check
      _
    $region10: #{contrastive_net_forward_batched.1} parent=5 // pred_check_branch
      %116 = sbr.rel (%p113) target = $region12
    $region11: #{contrastive_net_forward_batched.1} parent=5 // pred_region
      %s117 = ssub.s32 %s9, 1
      // Predicated region
      $region13: #{contrastive_net_forward_batched.1} parent=11 // pred_check
        %p118 = pneg %p56
      $region14: #{contrastive_net_forward_batched.1} parent=11 // pred_check_branch
        %120 = sbr.rel (%p118) target = $region16
      $region15: #{contrastive_net_forward_batched.1} parent=11 // pred_region
        _
      $region16: #{contrastive_net_forward_batched.1} parent=11 // pred_fallthru
        _
      // Predicated region
      $region17: #{contrastive_net_forward_batched.1} parent=11 // pred_check
        %p121 = pneg %p77
      $region18: #{contrastive_net_forward_batched.1} parent=11 // pred_check_branch
        %123 = sbr.rel (%p121) target = $region20
      $region19: #{contrastive_net_forward_batched.1} parent=11 // pred_region
        _
      $region20: #{contrastive_net_forward_batched.1} parent=11 // pred_fallthru
        _
    $region12: #{contrastive_net_forward_batched.1} parent=5 // pred_fallthru
      _
    %p124 = scmp.lt.s32.totalorder %s9, 4
    // Predicated region
    $region21: #{contrastive_net_forward_batched.1} parent=5 // pred_check
      %p125 = pneg %p124
    $region22: #{contrastive_net_forward_batched.1} parent=5 // pred_check_branch
      %127 = sbr.rel (%p125) target = $region24
    $region23: #{contrastive_net_forward_batched.1} parent=5 // pred_region
      // Predicated region
      $region25: #{contrastive_net_forward_batched.1} parent=23 // pred_check
        %p128 = pneg %p29
      $region26: #{contrastive_net_forward_batched.1} parent=23 // pred_check_branch
        %130 = sbr.rel (%p128) target = $region28
      $region27: #{contrastive_net_forward_batched.1} parent=23 // pred_region
        %p131 = scmp.lt.s32.totalorder %s9, 3
        %s132 = scalar_select %p131, %s9, 3
        %s133 = smul.addr %s132, 3
        %s134 = smul.addr %s133, 8
        %s135 = scalar_lea.vmem %s0, %s134
      $region28: #{contrastive_net_forward_batched.1} parent=23 // pred_fallthru
        _
    $region24: #{contrastive_net_forward_batched.1} parent=5 // pred_fallthru
      _
    %p136 = scmp.le.s32.totalorder 1, %s9
    %p137 = scmp.lt.s32.totalorder %s9, 5
    %p138 = pnand %p136, %p137
    %p139 = pneg %p138
    // Predicated region
    $region29: #{contrastive_net_forward_batched.1} parent=5 // pred_check
      _
    $region30: #{contrastive_net_forward_batched.1} parent=5 // pred_check_branch
      %141 = sbr.rel (%p138) target = $region32
    $region31: #{contrastive_net_forward_batched.1} parent=5 // pred_region
      %s142 = ssub.s32 %s9, 1
      %p143 = scmp.lt.s32.totalorder %s14, 3
      %s144 = scalar_select %p143, %s14, 3
      %s145 = smul.addr %s144, 3
      %s146 = smul.addr %s145, 8
      %s147 = scalar_lea.vmem %s0, %s146
      %p148 = pneg %p35
      %p149 = pneg %p32
      %p150 = pneg %p56
      %p151 = pneg %p53
      %p152 = pneg %p77
      %p153 = pneg %p74
      %p154 = pneg %p103
      %p155 = pneg %p100
      %p156 = scmp.lt.s32.totalorder %s14, 3
      %s157 = scalar_select %p156, %s14, 3
      %s158 = smul.addr %s157, 2
      %s159 = smul.addr %s158, 8
      %s160 = scalar_lea.vmem %s3, %s159
      %p161 = scmp.lt.s32.totalorder %s14, 3
      %s162 = scalar_select %p161, %s14, 3
      %s163 = smul.addr %s162, 3
      %s164 = smul.addr %s163, 8
      %s165 = scalar_lea.vmem %s0, %s164
      %p166 = scmp.lt.s32.totalorder %s14, 3
      %s167 = scalar_select %p166, %s14, 3
      %s168 = smul.addr %s167, 2
      %s169 = smul.addr %s168, 8
      %s170 = scalar_lea.vmem %s3, %s169
      %v171 = vld [vmem:[%s165] sm:$0xff]
      %v172 = vld [vmem:[%s165 + $0x8] sm:$0xff]
      %v173 = vld [vmem:[%s165 + $0x10] sm:$0xff]
      %v174 = vld [vmem:[%s1] sm:$0xff]
      %v175 = vld [vmem:[%s1 + $0x8] sm:$0xff]
      %v176 = vld [vmem:[%s1 + $0x10] sm:$0xff]
      %v177 = vld [vmem:[%s1 + $0x18] sm:$0xff]
      %v178 = vld [vmem:[%s2] sm:$0x1]
      %v179 = vld [vmem:[%s2 + $0x1] sm:$0x1]
      %v180 = vld [vmem:[%s2 + $0x2] sm:$0x1]
      %v181 = vlaneseq
      %v182 = vshrl.u32 %v181, 7
      %v183 = vsub.s32 0, %v182
      %v184 = vrot.slane %v178, %v183
      %vm185 = vcmask 261120
      %v187 = vsel %vm185, %v171, 0
      %v190 = vsel %vm185, %v172, 0
      %v193 = vsel %vm185, %v173, 0
      %195 = vmatprep.subr.mxu0 0.0
      %196 = vmatpush1.msra.mxu0 %v174
      %197 = vmatprep.subr.mxu0 0.0
      %198 = vmatpush1.msra.mxu0 %v175
      %199 = vmatprep.subr.mxu0 0.0
      %200 = vmatpush1.msra.mxu0 %v176
      %201 = vmatprep.subr.mxu0 0.0
      %202 = vmatpush1.msra.mxu0 %v177
      %203 = vmatprep.subr.mxu0 0.0
      %204 = vmatpush1.msra.mxu0 0.0
      %205 = vmatprep.subr.mxu0 0.0
      %206 = vmatpush1.msra.mxu0 0.0
      %207 = vmatprep.subr.mxu0 0.0
      %208 = vmatpush1.msra.mxu0 0.0
      %209 = vmatprep.subr.mxu0 0.0
      %210 = vmatpush1.msra.mxu0 0.0
      %211 = vmatprep.subr.mxu0 0.0
      %212 = vmatpush1.msra.mxu0 0.0
      %213 = vmatprep.subr.mxu0 0.0
      %214 = vmatpush1.msra.mxu0 0.0
      %215 = vmatprep.subr.mxu0 0.0
      %216 = vmatpush1.msra.mxu0 0.0
      %217 = vmatprep.subr.mxu0 0.0
      %218 = vmatpush1.msra.mxu0 0.0
      %219 = vmatprep.subr.mxu0 0.0
      %220 = vmatpush1.msra.mxu0 0.0
      %221 = vmatprep.subr.mxu0 0.0
      %222 = vmatpush1.msra.mxu0 0.0
      %223 = vmatprep.subr.mxu0 0.0
      %224 = vmatpush1.msra.mxu0 0.0
      %225 = vmatprep.subr.mxu0 0.0
      %226 = vmatpush1.msra.mxu0 0.0
      %227 = vmatprep.subr.mxu0 0.0
      %228 = vmatpush1.msra.mxu0 0.0
      %229 = vmatprep.subr.mxu0 0.0
      %230 = vmatpush1.msra.mxu0 0.0
      %231 = vmatprep.subr.mxu0 0.0
      %232 = vmatpush1.msra.mxu0 0.0
      %233 = vmatprep.subr.mxu0 0.0
      %234 = vmatpush1.msra.mxu0 0.0
      %235 = vmatprep.subr.mxu0 0.0
      %236 = vmatpush1.msra.mxu0 0.0
      %237 = vmatprep.subr.mxu0 0.0
      %238 = vmatpush1.msra.mxu0 0.0
      %239 = vmatprep.subr.mxu0 0.0
      %240 = vmatpush1.msra.mxu0 0.0
      %241 = vmatprep.subr.mxu0 0.0
      %242 = vmatpush1.msra.mxu0 0.0
      %243 = vmatprep.subr.mxu0 0.0
      %244 = vmatpush1.msra.mxu0 0.0
      %245 = vmatprep.subr.mxu0 0.0
      %246 = vmatpush1.msra.mxu0 0.0
      %247 = vmatprep.subr.mxu0 0.0
      %248 = vmatpush1.msra.mxu0 0.0
      %249 = vmatprep.subr.mxu0 0.0
      %250 = vmatpush1.msra.mxu0 0.0
      %251 = vmatprep.subr.mxu0 0.0
      %252 = vmatpush1.msra.mxu0 0.0
      %253 = vmatprep.subr.mxu0 0.0
      %254 = vmatpush1.msra.mxu0 0.0
      %255 = vmatprep.subr.mxu0 0.0
      %256 = vmatpush1.msra.mxu0 0.0
      %257 = vmatprep.subr.mxu0 0.0
      %258 = vmatpush1.msra.mxu0 0.0
      %259 = vmatprep.mubr.f32.mxu0 0.0
      %260 = vmatmul.mubr.f32.gmra.mrb[0].mxu0 %v187
      %v261 = vpop.f32.mrb[0].mxu0
      %v262 = vadd.f32 %v184, %v261
      %v263 = vpop.f32.mrb[0].mxu0
      %264 = vmatprep.mubr.f32.mxu0 0.0
      %265 = vmatmul.mubr.f32.gmra.mrb[0].mxu0 %v190
      %v266 = vpop.f32.mrb[0].mxu0
      %v267 = vadd.f32 %v184, %v266
      %v268 = vpop.f32.mrb[0].mxu0
      %269 = vmatprep.mubr.f32.mxu0 0.0
      %270 = vmatmul.mubr.f32.gmra.mrb[0].mxu0 %v193
      %v271 = vpop.f32.mrb[0].mxu0
      %v272 = vadd.f32 %v184, %v271
      %v273 = vpop.f32.mrb[0].mxu0
      %274 = vdwg.mxu0
      %v275 = vsel %vm185, %v262, 0.0
      %v276 = vsel %vm185, %v267, 0.0
      %v277 = vadd.f32 %v275, %v276
      %v278 = vsel %vm185, %v272, 0.0
      %v279 = vadd.f32 %v277, %v278
      %v280 = vrot.slane %v279, 4
      %v281 = vadd.f32 %v279, %v280
      %v282 = vrot.slane %v281, 2
      %v283 = vadd.f32 %v281, %v282
      %v284 = vrot.slane %v283, 1
      %v285 = vadd.f32 %v283, %v284
      %v286 = vrcp.pop 24.0
      %v287 = vmul.f32 %v285, %v286
      %v288 = vsub.f32 %v262, %v287
      %v289 = vsub.f32 %v267, %v287
      %v290 = vsub.f32 %v272, %v287
      %v291 = vmul.f32 %v288, %v288
      %v292 = vmul.f32 %v289, %v289
      %v293 = vmul.f32 %v290, %v290
      %v294 = vsel %vm185, %v291, 0.0
      %v295 = vsel %vm185, %v292, 0.0
      %v296 = vadd.f32 %v294, %v295
      %v297 = vsel %vm185, %v293, 0.0
      %v298 = vadd.f32 %v296, %v297
      %v299 = vrot.slane %v298, 4
      %v300 = vadd.f32 %v298, %v299
      %v301 = vrot.slane %v300, 2
      %v302 = vadd.f32 %v300, %v301
      %v303 = vrot.slane %v302, 1
      %v304 = vadd.f32 %v302, %v303
      %v305 = vmul.f32 %v304, %v286
      %v306 = vadd.f32 %v305, 1e-05
      %v307 = vrsqrt.pop %v306
      %v308 = vmul.f32 %v179, %v307
      %v309 = vlaneseq
      %v310 = vshrl.u32 %v309, 7
      %v311 = vsub.s32 0, %v310
      %v312 = vrot.slane %v308, %v311
      %v313 = vmul.f32 %v262, %v312
      %v314 = vmul.f32 %v267, %v312
      %v315 = vmul.f32 %v272, %v312
      %v316 = vmul.f32 %v287, %v308
      %v317 = vsub.f32 %v180, %v316
      %v318 = vlaneseq
      %v319 = vshrl.u32 %v318, 7
      %v320 = vsub.s32 0, %v319
      %v321 = vrot.slane %v317, %v320
      %v322 = vadd.f32 %v313, %v321
      %v323 = vadd.f32 %v314, %v321
      %v324 = vadd.f32 %v315, %v321
      %v325 = vmax.f32 %v322, 0.0
      %v326 = vmax.f32 %v323, 0.0
      %v327 = vmax.f32 %v324, 0.0
      %s328 = scalar_lea.vmem %s1, 32
      %v329 = vld [vmem:[%s328] sm:$0xff]
      %v330 = vld [vmem:[%s328 + $0x8] sm:$0xff]
      %v331 = vld [vmem:[%s328 + $0x10] sm:$0xff]
      %v332 = vld [vmem:[%s328 + $0x18] sm:$0xff]
      %v333 = vld [vmem:[%s2 + $0x3] sm:$0x1]
      %v334 = vld [vmem:[%s2 + $0x4] sm:$0x1]
      %v335 = vld [vmem:[%s2 + $0x5] sm:$0x1]
      %v336 = vlaneseq
      %v337 = vshrl.u32 %v336, 7
      %v338 = vsub.s32 0, %v337
      %v339 = vrot.slane %v333, %v338
      %v341 = vsel %vm185, %v325, 0
      %v344 = vsel %vm185, %v326, 0
      %v347 = vsel %vm185, %v327, 0
      %349 = vmatprep.subr.mxu0 0.0
      %350 = vmatpush1.msra.mxu0 %v329
      %351 = vmatprep.subr.mxu0 0.0
      %352 = vmatpush1.msra.mxu0 %v330
      %353 = vmatprep.subr.mxu0 0.0
      %354 = vmatpush1.msra.mxu0 %v331
      %355 = vmatprep.subr.mxu0 0.0
      %356 = vmatpush1.msra.mxu0 %v332
      %357 = vmatprep.subr.mxu0 0.0
      %358 = vmatpush1.msra.mxu0 0.0
      %359 = vmatprep.subr.mxu0 0.0
      %360 = vmatpush1.msra.mxu0 0.0
      %361 = vmatprep.subr.mxu0 0.0
      %362 = vmatpush1.msra.mxu0 0.0
      %363 = vmatprep.subr.mxu0 0.0
      %364 = vmatpush1.msra.mxu0 0.0
      %365 = vmatprep.subr.mxu0 0.0
      %366 = vmatpush1.msra.mxu0 0.0
      %367 = vmatprep.subr.mxu0 0.0
      %368 = vmatpush1.msra.mxu0 0.0
      %369 = vmatprep.subr.mxu0 0.0
      %370 = vmatpush1.msra.mxu0 0.0
      %371 = vmatprep.subr.mxu0 0.0
      %372 = vmatpush1.msra.mxu0 0.0
      %373 = vmatprep.subr.mxu0 0.0
      %374 = vmatpush1.msra.mxu0 0.0
      %375 = vmatprep.subr.mxu0 0.0
      %376 = vmatpush1.msra.mxu0 0.0
      %377 = vmatprep.subr.mxu0 0.0
      %378 = vmatpush1.msra.mxu0 0.0
      %379 = vmatprep.subr.mxu0 0.0
      %380 = vmatpush1.msra.mxu0 0.0
      %381 = vmatprep.subr.mxu0 0.0
      %382 = vmatpush1.msra.mxu0 0.0
      %383 = vmatprep.subr.mxu0 0.0
      %384 = vmatpush1.msra.mxu0 0.0
      %385 = vmatprep.subr.mxu0 0.0
      %386 = vmatpush1.msra.mxu0 0.0
      %387 = vmatprep.subr.mxu0 0.0
      %388 = vmatpush1.msra.mxu0 0.0
      %389 = vmatprep.subr.mxu0 0.0
      %390 = vmatpush1.msra.mxu0 0.0
      %391 = vmatprep.subr.mxu0 0.0
      %392 = vmatpush1.msra.mxu0 0.0
      %393 = vmatprep.subr.mxu0 0.0
      %394 = vmatpush1.msra.mxu0 0.0
      %395 = vmatprep.subr.mxu0 0.0
      %396 = vmatpush1.msra.mxu0 0.0
      %397 = vmatprep.subr.mxu0 0.0
      %398 = vmatpush1.msra.mxu0 0.0
      %399 = vmatprep.subr.mxu0 0.0
      %400 = vmatpush1.msra.mxu0 0.0
      %401 = vmatprep.subr.mxu0 0.0
      %402 = vmatpush1.msra.mxu0 0.0
      %403 = vmatprep.subr.mxu0 0.0
      %404 = vmatpush1.msra.mxu0 0.0
      %405 = vmatprep.subr.mxu0 0.0
      %406 = vmatpush1.msra.mxu0 0.0
      %407 = vmatprep.subr.mxu0 0.0
      %408 = vmatpush1.msra.mxu0 0.0
      %409 = vmatprep.subr.mxu0 0.0
      %410 = vmatpush1.msra.mxu0 0.0
      %411 = vmatprep.subr.mxu0 0.0
      %412 = vmatpush1.msra.mxu0 0.0
      %413 = vmatprep.mubr.f32.mxu0 0.0
      %414 = vmatmul.mubr.f32.gmra.mrb[0].mxu0 %v341
      %v415 = vpop.f32.mrb[0].mxu0
      %v416 = vadd.f32 %v339, %v415
      %v417 = vpop.f32.mrb[0].mxu0
      %418 = vmatprep.mubr.f32.mxu0 0.0
      %419 = vmatmul.mubr.f32.gmra.mrb[0].mxu0 %v344
      %v420 = vpop.f32.mrb[0].mxu0
      %v421 = vadd.f32 %v339, %v420
      %v422 = vpop.f32.mrb[0].mxu0
      %423 = vmatprep.mubr.f32.mxu0 0.0
      %424 = vmatmul.mubr.f32.gmra.mrb[0].mxu0 %v347
      %v425 = vpop.f32.mrb[0].mxu0
      %v426 = vadd.f32 %v339, %v425
      %v427 = vpop.f32.mrb[0].mxu0
      %428 = vdwg.mxu0
      %v429 = vsel %vm185, %v416, 0.0
      %v430 = vsel %vm185, %v421, 0.0
      %v431 = vadd.f32 %v429, %v430
      %v432 = vsel %vm185, %v426, 0.0
      %v433 = vadd.f32 %v431, %v432
      %v434 = vrot.slane %v433, 4
      %v435 = vadd.f32 %v433, %v434
      %v436 = vrot.slane %v435, 2
      %v437 = vadd.f32 %v435, %v436
      %v438 = vrot.slane %v437, 1
      %v439 = vadd.f32 %v437, %v438
      %v440 = vmul.f32 %v439, %v286
      %v441 = vsub.f32 %v416, %v440
      %v442 = vsub.f32 %v421, %v440
      %v443 = vsub.f32 %v426, %v440
      %v444 = vmul.f32 %v441, %v441
      %v445 = vmul.f32 %v442, %v442
      %v446 = vmul.f32 %v443, %v443
      %v447 = vsel %vm185, %v444, 0.0
      %v448 = vsel %vm185, %v445, 0.0
      %v449 = vadd.f32 %v447, %v448
      %v450 = vsel %vm185, %v446, 0.0
      %v451 = vadd.f32 %v449, %v450
      %v452 = vrot.slane %v451, 4
      %v453 = vadd.f32 %v451, %v452
      %v454 = vrot.slane %v453, 2
      %v455 = vadd.f32 %v453, %v454
      %v456 = vrot.slane %v455, 1
      %v457 = vadd.f32 %v455, %v456
      %v458 = vmul.f32 %v457, %v286
      %v459 = vadd.f32 %v458, 1e-05
      %v460 = vrsqrt.pop %v459
      %v461 = vmul.f32 %v334, %v460
      %v462 = vlaneseq
      %v463 = vshrl.u32 %v462, 7
      %v464 = vsub.s32 0, %v463
      %v465 = vrot.slane %v461, %v464
      %v466 = vmul.f32 %v416, %v465
      %v467 = vmul.f32 %v421, %v465
      %v468 = vmul.f32 %v426, %v465
      %v469 = vmul.f32 %v440, %v461
      %v470 = vsub.f32 %v335, %v469
      %v471 = vlaneseq
      %v472 = vshrl.u32 %v471, 7
      %v473 = vsub.s32 0, %v472
      %v474 = vrot.slane %v470, %v473
      %v475 = vadd.f32 %v466, %v474
      %v476 = vadd.f32 %v467, %v474
      %v477 = vadd.f32 %v468, %v474
      %v478 = vmax.f32 %v475, 0.0
      %v479 = vmax.f32 %v476, 0.0
      %v480 = vmax.f32 %v477, 0.0
      %s481 = scalar_lea.vmem %s1, 64
      %v482 = vld [vmem:[%s481] sm:$0xff]
      %v483 = vld [vmem:[%s481 + $0x8] sm:$0xff]
      %v484 = vld [vmem:[%s481 + $0x10] sm:$0xff]
      %v485 = vld [vmem:[%s481 + $0x18] sm:$0xff]
      %v486 = vld [vmem:[%s2 + $0x6] sm:$0x1]
      %v487 = vlaneseq
      %v488 = vshrl.u32 %v487, 7
      %v489 = vsub.s32 0, %v488
      %v490 = vrot.slane %v486, %v489
      %v492 = vsel %vm185, %v478, 0
      %v495 = vsel %vm185, %v479, 0
      %v498 = vsel %vm185, %v480, 0
      %500 = vmatprep.subr.mxu0 0.0
      %501 = vmatpush1.msra.mxu0 %v482
      %502 = vmatprep.subr.mxu0 0.0
      %503 = vmatpush1.msra.mxu0 %v483
      %504 = vmatprep.subr.mxu0 0.0
      %505 = vmatpush1.msra.mxu0 %v484
      %506 = vmatprep.subr.mxu0 0.0
      %507 = vmatpush1.msra.mxu0 %v485
      %508 = vmatprep.subr.mxu0 0.0
      %509 = vmatpush1.msra.mxu0 0.0
      %510 = vmatprep.subr.mxu0 0.0
      %511 = vmatpush1.msra.mxu0 0.0
      %512 = vmatprep.subr.mxu0 0.0
      %513 = vmatpush1.msra.mxu0 0.0
      %514 = vmatprep.subr.mxu0 0.0
      %515 = vmatpush1.msra.mxu0 0.0
      %516 = vmatprep.subr.mxu0 0.0
      %517 = vmatpush1.msra.mxu0 0.0
      %518 = vmatprep.subr.mxu0 0.0
      %519 = vmatpush1.msra.mxu0 0.0
      %520 = vmatprep.subr.mxu0 0.0
      %521 = vmatpush1.msra.mxu0 0.0
      %522 = vmatprep.subr.mxu0 0.0
      %523 = vmatpush1.msra.mxu0 0.0
      %524 = vmatprep.subr.mxu0 0.0
      %525 = vmatpush1.msra.mxu0 0.0
      %526 = vmatprep.subr.mxu0 0.0
      %527 = vmatpush1.msra.mxu0 0.0
      %528 = vmatprep.subr.mxu0 0.0
      %529 = vmatpush1.msra.mxu0 0.0
      %530 = vmatprep.subr.mxu0 0.0
      %531 = vmatpush1.msra.mxu0 0.0
      %532 = vmatprep.subr.mxu0 0.0
      %533 = vmatpush1.msra.mxu0 0.0
      %534 = vmatprep.subr.mxu0 0.0
      %535 = vmatpush1.msra.mxu0 0.0
      %536 = vmatprep.subr.mxu0 0.0
      %537 = vmatpush1.msra.mxu0 0.0
      %538 = vmatprep.subr.mxu0 0.0
      %539 = vmatpush1.msra.mxu0 0.0
      %540 = vmatprep.subr.mxu0 0.0
      %541 = vmatpush1.msra.mxu0 0.0
      %542 = vmatprep.subr.mxu0 0.0
      %543 = vmatpush1.msra.mxu0 0.0
      %544 = vmatprep.subr.mxu0 0.0
      %545 = vmatpush1.msra.mxu0 0.0
      %546 = vmatprep.subr.mxu0 0.0
      %547 = vmatpush1.msra.mxu0 0.0
      %548 = vmatprep.subr.mxu0 0.0
      %549 = vmatpush1.msra.mxu0 0.0
      %550 = vmatprep.subr.mxu0 0.0
      %551 = vmatpush1.msra.mxu0 0.0
      %552 = vmatprep.subr.mxu0 0.0
      %553 = vmatpush1.msra.mxu0 0.0
      %554 = vmatprep.subr.mxu0 0.0
      %555 = vmatpush1.msra.mxu0 0.0
      %556 = vmatprep.subr.mxu0 0.0
      %557 = vmatpush1.msra.mxu0 0.0
      %558 = vmatprep.subr.mxu0 0.0
      %559 = vmatpush1.msra.mxu0 0.0
      %560 = vmatprep.subr.mxu0 0.0
      %561 = vmatpush1.msra.mxu0 0.0
      %562 = vmatprep.subr.mxu0 0.0
      %563 = vmatpush1.msra.mxu0 0.0
      %564 = vmatprep.mubr.f32.mxu0 0.0
      %565 = vmatmul.mubr.f32.gmra.mrb[0].mxu0 %v492
      %v566 = vpop.f32.mrb[0].mxu0
      %v567 = vadd.f32 %v490, %v566
      %v568 = vpop.f32.mrb[0].mxu0
      %569 = vmatprep.mubr.f32.mxu0 0.0
      %570 = vmatmul.mubr.f32.gmra.mrb[0].mxu0 %v495
      %v571 = vpop.f32.mrb[0].mxu0
      %v572 = vadd.f32 %v490, %v571
      %v573 = vpop.f32.mrb[0].mxu0
      %574 = vmatprep.mubr.f32.mxu0 0.0
      %575 = vmatmul.mubr.f32.gmra.mrb[0].mxu0 %v498
      %v576 = vpop.f32.mrb[0].mxu0
      %v577 = vadd.f32 %v490, %v576
      %v578 = vpop.f32.mrb[0].mxu0
      %579 = vdwg.mxu0
      %v580 = vld [vmem:[%s2 + $0x7] sm:$0x1]
      %v581 = vld [vmem:[%s2 + $0x8] sm:$0x1]
      %v582 = vsub.f32 %v567, %v572
      %v583 = vand.u32 2147483647, %v582
      %v584 = vlaneseq
      %v585 = vshrl.u32 %v584, 7
      %v586 = vsub.s32 0, %v585
      %v587 = vrot.slane %v580, %v586
      %v588 = vmul.f32 %v583, %v587
      %v589 = vsel %vm185, %v588, 0.0
      %590 = vadd.xlane.f32.xlu0 %v589
      %v591 = vpop.xlane.xlu0 %590
      %v592 = vlaneseq
      %v593 = vshrl.u32 %v592, 7
      %v594 = vsub.s32 0, %v593
      %v595 = vrot.slane %v581, %v594
      %v596 = vadd.f32 %v591, %v595
      %vm597 = vcmask 7168
      %598 = vst.msk [vmem:[%s170] sm:$0xff] %vm597, %v596
      %v599 = vsub.f32 %v567, %v577
      %v600 = vand.u32 2147483647, %v599
      %v601 = vmul.f32 %v600, %v587
      %v602 = vsel %vm185, %v601, 0.0
      %603 = vadd.xlane.f32.xlu0 %v602
      %v604 = vpop.xlane.xlu0 %603
      %v605 = vadd.f32 %v604, %v595
      %606 = vst.msk [vmem:[%s170 + $0x8] sm:$0xff] %vm597, %v605
      %p607 = scmp.lt.s32.totalorder %s14, 3
      %s608 = scalar_select %p607, %s14, 3
      %s609 = smul.addr %s608, 2
      %s610 = smul.addr %s609, 8
      %s611 = scalar_lea.vmem %s3, %s610
      // Predicated region
      $region33: #{contrastive_net_forward_batched.1} parent=31 // pred_check
        %p612 = pneg %p100
      $region34: #{contrastive_net_forward_batched.1} parent=31 // pred_check_branch
        %614 = sbr.rel (%p612) target = $region36
      $region35: #{contrastive_net_forward_batched.1} parent=31 // pred_region
        _
      $region36: #{contrastive_net_forward_batched.1} parent=31 // pred_fallthru
        _
    $region32: #{contrastive_net_forward_batched.1} parent=5 // pred_fallthru
      _
    %p615 = scmp.le.s32.totalorder 2, %s9
    // Predicated region
    $region37: #{contrastive_net_forward_batched.1} parent=5 // pred_check
      %p616 = pneg %p615
    $region38: #{contrastive_net_forward_batched.1} parent=5 // pred_check_branch
      %618 = sbr.rel (%p616) target = $region40
    $region39: #{contrastive_net_forward_batched.1} parent=5 // pred_region
      %s619 = ssub.s32 %s9, 2
      // Predicated region
      $region41: #{contrastive_net_forward_batched.1} parent=39 // pred_check
        %p620 = pneg %p106
      $region42: #{contrastive_net_forward_batched.1} parent=39 // pred_check_branch
        %622 = sbr.rel (%p620) target = $region44
      $region43: #{contrastive_net_forward_batched.1} parent=39 // pred_region
        %p623 = scmp.lt.s32.totalorder %s15, 3
        %s624 = scalar_select %p623, %s15, 3
        %s625 = smul.addr %s624, 2
        %s626 = smul.addr %s625, 8
        %s627 = scalar_lea.vmem %s3, %s626
      $region44: #{contrastive_net_forward_batched.1} parent=39 // pred_fallthru
        _
    $region40: #{contrastive_net_forward_batched.1} parent=5 // pred_fallthru
      _
  $region6: #{contrastive_net_forward_batched.1} parent=0 // loop_footer
    %s13 = sadd.s32 1, %s9
  $region7: #{contrastive_net_forward_batched.1} parent=0 // loop_footer_branch
    %8 = sbr.rel target = $region3
  $region8: #{contrastive_net_forward_batched.1} parent=0 // loop_exit
    _

</llo_original>
